<compile_context>
chip_gen: v7x
topology: tpu7x:2x2x1
jax: 0.10.0
libtpu: 0.0.40
codegen_flags: <defaults>
</compile_context>

<pallas_src>
import numpy as np
import jax
import jax.numpy as jnp
from jax.experimental import pallas as pl
from jax.experimental.pallas import tpu as pltpu

# ---------------- model constants (small synthetic SMPL) ----------------
V = 256                 # number of vertices (real SMPL: 6890) -- synthetic, small
J = 24                  # 1 global + 23 body joints (fixed by SMPL)
NB = 10                 # num_betas
P = (J - 1) * 9         # pose-corrective basis size = 207
B = 2                   # batch size

# padded sizes (sublane / layout friendly)
BP = 8                  # batch padded to one full sublane group
NB_PAD = 16             # betas block (rows 0..9 shapedirs, row 10 v_template)
P_PAD = 208
J_PAD = 32
K_FUSED = NB_PAD + P_PAD        # 224 fused contraction dim

# standard SMPL kinematic tree
PARENTS = np.array([-1, 0, 0, 0, 1, 2, 3, 4, 5, 6, 7, 8, 9, 9, 9,
                    12, 13, 14, 16, 17, 18, 19, 20, 21], dtype=np.int64)

# kinematic-tree depth levels (contiguous joint-index ranges, parent < child)
LEVEL_BOUNDS = [(0, 1), (1, 4), (4, 7), (7, 10), (10, 15),
                (15, 18), (18, 20), (20, 22), (22, 24)]

# TODO(synk): real VertexJointSelector uses the VERTEX_IDS['smplh'] lookup table
# (21 face/feet/fingertip vertex ids); here we use deterministic synthetic ids.
EXTRA_JOINT_IDXS = (np.arange(21) * 11) % V


# ============================ fused Pallas kernel ============================

def _smpl_lbs_kernel(fused_ref, at_ref, wfused_ref, wt_ref,
                     vshaped_ref, vposed_ref, tt_ref, verts_ref):
    # fused_ref:  (BP, 224)     [betas(10) | 1 | 0*5 | pose_feature(207) | 0]
    # at_ref:     (12*BP, 32)   component-major top-3-rows of A, (12, BP, J_PAD)
    # wfused_ref: (224, 3V)     [shapedirs | v_template | 0 | posedirs | 0] rows
    # wt_ref:     (32, V)       lbs_weights^T (zero-padded joint rows)
    fused = fused_ref[...]

    # v_posed = betas@shapedirs + v_template + pose_feature@posedirs
    # single K=224 MXU pass                                      (BP,224)@(224,3V)
    vp = jnp.dot(fused, wfused_ref[...], preferred_element_type=jnp.float32)
    vposed_ref[...] = vp

    # v_shaped = betas@shapedirs + v_template (tiny K=16 split-out dot)
    vs = jnp.dot(fused[:, 0:NB_PAD], wfused_ref[0:NB_PAD, :],
                 preferred_element_type=jnp.float32)
    vshaped_ref[...] = vs

    # top-3-rows of T, batch folded into M:  (12*BP, 32) @ (32, V) -> (12*BP, V)
    tt = jnp.dot(at_ref[...], wt_ref[...], preferred_element_type=jnp.float32)
    tt_ref[...] = tt

    # vertices = (T @ [v_posed; 1])[:3] -- fully vectorized over the batch:
    # every tt slice is an aligned (BP, V) block, every store is a full
    # lane-dense (BP, V) write at a 128-lane-aligned offset.
    vx = vp[:, 0:V]
    vy = vp[:, V:2 * V]
    vz = vp[:, 2 * V:3 * V]
    verts_ref[:, 0:V] = (tt[0 * BP:1 * BP] * vx + tt[1 * BP:2 * BP] * vy
                         + tt[2 * BP:3 * BP] * vz + tt[3 * BP:4 * BP])
    verts_ref[:, V:2 * V] = (tt[4 * BP:5 * BP] * vx + tt[5 * BP:6 * BP] * vy
                             + tt[6 * BP:7 * BP] * vz + tt[7 * BP:8 * BP])
    verts_ref[:, 2 * V:3 * V] = (tt[8 * BP:9 * BP] * vx + tt[9 * BP:10 * BP] * vy
                                 + tt[10 * BP:11 * BP] * vz + tt[11 * BP:12 * BP])


def smpl_lbs_pallas(fused, a_t, params):
    # Whole problem in one block (no grid): the largest operand (the fused
    # (224, 3V) weight, ~688 KiB) fits trivially in VMEM at this size.
    vmem = pl.BlockSpec(memory_space=pltpu.MemorySpace.VMEM)
    return pl.pallas_call(
        _smpl_lbs_kernel,
        in_specs=[vmem, vmem, vmem, vmem],
        out_specs=(vmem, vmem, vmem, vmem),
        out_shape=(jax.ShapeDtypeStruct((BP, 3 * V), jnp.float32),      # v_shaped
                   jax.ShapeDtypeStruct((BP, 3 * V), jnp.float32),      # v_posed
                   jax.ShapeDtypeStruct((12 * BP, V), jnp.float32),     # T top rows
                   jax.ShapeDtypeStruct((BP, 3 * V), jnp.float32)),     # vertices
    )(fused, a_t, params['w_fused'], params['w_t'])


# ==================== JAX glue (small joint-sized math) ====================

def batch_rodrigues(rot_vecs):
    """Axis-angle (N,3) -> rotation matrices (N,3,3), matching smplx batch_rodrigues."""
    angle = jnp.linalg.norm(rot_vecs + 1e-8, axis=1, keepdims=True)     # (N,1)
    rot_dir = rot_vecs / angle
    cos = jnp.cos(angle)[:, None, :]                                    # (N,1,1)
    sin = jnp.sin(angle)[:, None, :]
    rx, ry, rz = jnp.split(rot_dir, 3, axis=1)
    zeros = jnp.zeros_like(rx)
    K = jnp.concatenate([zeros, -rz, ry, rz, zeros, -rx, -ry, rx, zeros],
                        axis=1).reshape(-1, 3, 3)
    ident = jnp.eye(3, dtype=rot_vecs.dtype)[None]
    return ident + sin * K + (1 - cos) * jnp.matmul(K, K)


def batch_rigid_transform(rot_mats, joints, parents):
    """rot_mats (B,J,3,3), joints (B,J,3) -> posed_joints (B,J,3), A (B,J,4,4).

    The kinematic chain is batched by tree depth: 8 batched (B,n,4,4) matmuls
    instead of 23 sequential (B,4,4) matmuls.
    """
    bsz, nj, _ = joints.shape
    dtype = joints.dtype
    joints_e = joints[..., None]                                        # (B,J,3,1)
    rel = joints_e.at[:, 1:].add(-joints_e[:, parents[1:]])
    top = jnp.concatenate([rot_mats, rel], axis=-1)                     # (B,J,3,4)
    bottom = jnp.broadcast_to(jnp.array([0., 0., 0., 1.], dtype)[None, None, None, :],
                              (bsz, nj, 1, 4))
    transforms_mat = jnp.concatenate([top, bottom], axis=2)             # (B,J,4,4)

    done = transforms_mat[:, 0:1]                                       # (B,1,4,4)
    for lo, hi in LEVEL_BOUNDS[1:]:
        par_idx = parents[lo:hi]                    # static numpy indices (< lo)
        parent_t = done[:, par_idx]                                     # (B,n,4,4)
        local_t = transforms_mat[:, lo:hi]
        done = jnp.concatenate([done, jnp.matmul(parent_t, local_t)], axis=1)
    transforms = done                                                   # (B,J,4,4)

    posed_joints = transforms[:, :, :3, 3]
    joints_h = jnp.concatenate([joints_e, jnp.zeros((bsz, nj, 1, 1), dtype)], axis=2)
    tj = jnp.matmul(transforms, joints_h)                               # (B,J,4,1)
    rel_transforms = transforms - jnp.concatenate(
        [jnp.zeros((bsz, nj, 4, 3), dtype), tj], axis=-1)
    return posed_joints, rel_transforms


def _flat_to_bv3(x):
    bsz = x.shape[0]
    return x.reshape(bsz, 3, V).transpose(0, 2, 1)                      # (B, V, 3)


def smpl_forward(params, betas, body_pose, global_orient, transl):
    bsz = betas.shape[0]
    full_pose = jnp.concatenate([global_orient, body_pose], axis=1)     # (B, 72)

    # --- pose -> rotation matrices, pose feature (glue) ---
    rot_mats = batch_rodrigues(full_pose.reshape(-1, 3)).reshape(bsz, J, 3, 3)
    ident = jnp.eye(3, dtype=jnp.float32)
    pose_feature = (rot_mats[:, 1:] - ident).reshape(bsz, P)            # (B, 207)

    # --- rest-pose joints via algebraically folded regressor (tiny matmul) ---
    joints0 = (params['j_template_flat'][None]
               + betas @ params['j_shapedirs']).reshape(bsz, J, 3)      # (B, J, 3)

    # --- kinematic chain (glue, depth-batched) ---
    J_transformed, A = batch_rigid_transform(rot_mats, joints0, PARENTS)

    # --- fused activation (BP, 224): [betas | 1 | 0 | pose_feature | 0] ---
    fused = jnp.zeros((BP, K_FUSED), jnp.float32)
    fused = fused.at[:bsz, 0:NB].set(betas)
    fused = fused.at[:bsz, NB].set(1.0)                # picks up v_template row
    fused = fused.at[:bsz, NB_PAD:NB_PAD + P].set(pose_feature)

    # --- skinning transforms: top-3 rows of A, component-major (12, BP, J_PAD) ---
    a_top = A[:, :, :3, :].reshape(bsz, J, 12)                          # (B, J, 12)
    a_t = jnp.zeros((12, BP, J_PAD), jnp.float32)
    a_t = a_t.at[:, :bsz, :J].set(a_top.transpose(2, 0, 1))
    a_t = a_t.reshape(12 * BP, J_PAD)

    # --- fused LBS kernel ---
    vshaped_f, vposed_f, tt, verts_f = smpl_lbs_pallas(fused, a_t, params)

    v_shaped = _flat_to_bv3(vshaped_f[:bsz])
    v_posed = _flat_to_bv3(vposed_f[:bsz])
    vertices = _flat_to_bv3(verts_f[:bsz])
    shape_offsets = v_shaped - params['v_template'][None]
    pose_offsets = v_posed - v_shaped

    # T: reconstruct constant bottom row dropped from the kernel matmul
    T_top = tt.reshape(12, BP, V)[:, :bsz].transpose(1, 2, 0).reshape(bsz, V, 3, 4)
    T_bot = jnp.broadcast_to(jnp.array([0., 0., 0., 1.], jnp.float32)[None, None, None, :],
                             (bsz, V, 1, 4))
    T = jnp.concatenate([T_top, T_bot], axis=2)                         # (B, V, 4, 4)

    # --- vertex_joint_selector + transl (glue) ---
    extra_joints = jnp.take(vertices, jnp.asarray(EXTRA_JOINT_IDXS), axis=1)
    joints_out = jnp.concatenate([J_transformed, extra_joints], axis=1)  # (B, 45, 3)
    joints_out = joints_out + transl[:, None]
    vertices = vertices + transl[:, None]
    A = A.at[..., :3, 3].add(transl[:, None])
    T = T.at[..., :3, 3].add(transl[:, None])

    return dict(vertices=vertices, joints=joints_out, betas=betas,
                body_pose=body_pose, global_orient=global_orient,
                full_pose=full_pose, A=A, T=T, shape_offsets=shape_offsets,
                pose_offsets=pose_offsets, v_posed=v_posed, v_shaped=v_shaped)


# ==================== deterministic parameter init ====================

def init_params(key):
    ks = jax.random.split(key, 5)
    v_template = jax.random.normal(ks[0], (V, 3), jnp.float32) * 0.1
    shapedirs = jax.random.normal(ks[1], (V, 3, NB), jnp.float32) * 0.01
    posedirs_can = jax.random.normal(ks[2], (V, 3, P), jnp.float32) * 0.01
    J_regressor = jax.nn.softmax(jax.random.normal(ks[3], (J, V), jnp.float32), axis=-1)
    lbs_weights = jax.nn.softmax(jax.random.normal(ks[4], (V, J), jnp.float32) * 2.0, axis=-1)

    # fused blend-shape weight, coordinate-major flat index = c*V + v:
    #   rows 0..9   : shapedirs
    #   row  10     : v_template   (driven by the constant "1" input column)
    #   rows 16..222: posedirs
    #   rest        : zero padding
    # TODO(synk): at real SMPL size store this in bfloat16 (keep f32 accumulation).
    sdirs_k = shapedirs.transpose(2, 1, 0).reshape(NB, 3 * V)            # (10, 3V)
    pdirs_k = posedirs_can.transpose(2, 1, 0).reshape(P, 3 * V)          # (207, 3V)
    vt_flat = v_template.T.reshape(3 * V)                                # (3V,)
    w_fused = jnp.zeros((K_FUSED, 3 * V), jnp.float32)
    w_fused = w_fused.at[0:NB].set(sdirs_k)
    w_fused = w_fused.at[NB].set(vt_flat)
    w_fused = w_fused.at[NB_PAD:NB_PAD + P].set(pdirs_k)

    w_t = jnp.pad(lbs_weights.T, ((0, J_PAD - J), (0, 0)))               # (32, V)

    # joint regressor folded into the shape space (replaces the (3V,3J) kron)
    j_template_flat = (J_regressor @ v_template).reshape(3 * J)          # (72,)
    j_shapedirs = jnp.einsum('jv,vcn->njc', J_regressor,
                             shapedirs).reshape(NB, 3 * J)               # (10, 72)

    return dict(v_template=v_template, w_fused=w_fused, w_t=w_t,
                j_template_flat=j_template_flat, j_shapedirs=j_shapedirs)


if __name__ == "__main__":
    key = jax.random.PRNGKey(0)
    kp, kb, kpose, kgo, kt = jax.random.split(key, 5)
    params = init_params(kp)

    betas = jax.random.normal(kb, (B, NB), jnp.float32) * 0.5
    body_pose = jax.random.normal(kpose, (B, 23 * 3), jnp.float32) * 0.2
    global_orient = jax.random.normal(kgo, (B, 3), jnp.float32) * 0.2
    transl = jax.random.normal(kt, (B, 3), jnp.float32) * 0.1

    out = jax.jit(smpl_forward)(params, betas, body_pose, global_orient, transl)
    jax.block_until_ready(out)

    assert out['vertices'].shape == (B, V, 3)
    assert out['joints'].shape == (B, J + len(EXTRA_JOINT_IDXS), 3)
    assert out['A'].shape == (B, J, 4, 4)
    assert out['T'].shape == (B, V, 4, 4)
    assert out['v_posed'].shape == (B, V, 3)
    assert out['v_shaped'].shape == (B, V, 3)
    print("KERNEL_OK")
</pallas_src>

<mosaic_0001>
module attributes {stable_mosaic.version = 11 : i64} {
  func.func @_smpl_lbs_kernel(%arg0: memref<8x224xf32, #tpu.memory_space<vmem>>, %arg1: memref<96x32xf32, #tpu.memory_space<vmem>>, %arg2: memref<224x768xf32, #tpu.memory_space<vmem>>, %arg3: memref<32x256xf32, #tpu.memory_space<vmem>>, %arg4: memref<8x768xf32, #tpu.memory_space<vmem>>, %arg5: memref<8x768xf32, #tpu.memory_space<vmem>>, %arg6: memref<96x256xf32, #tpu.memory_space<vmem>>, %arg7: memref<8x768xf32, #tpu.memory_space<vmem>>) attributes {dimension_semantics = [], scalar_prefetch = 0 : i64, scratch_operands = 0 : i64, tpu.core_type = #tpu.core_type<tc>} {
    %c0 = arith.constant 0 : index
    %c0_0 = arith.constant 0 : index
    %0 = vector.load %arg0[%c0, %c0_0] : memref<8x224xf32, #tpu.memory_space<vmem>>, vector<8x224xf32>
    %c0_1 = arith.constant 0 : index
    %c0_2 = arith.constant 0 : index
    %1 = vector.load %arg2[%c0_1, %c0_2] : memref<224x768xf32, #tpu.memory_space<vmem>>, vector<224x768xf32>
    %cst = arith.constant dense<0.000000e+00> : vector<8x768xf32>
    %2 = tpu.matmul %0, %1, %cst {dimension_numbers = #tpu.dot_dimension_numbers<[1], [0], [0], [1], [0, 0, 1, 1], [], []>} : vector<8x224xf32>, vector<224x768xf32>, vector<8x768xf32> -> vector<8x768xf32>
    %c0_3 = arith.constant 0 : index
    %c0_4 = arith.constant 0 : index
    %3 = vector.load %arg5[%c0_3, %c0_4] : memref<8x768xf32, #tpu.memory_space<vmem>>, vector<8x768xf32>
    tpu.vector_store %arg5[%c0_3, %c0_4], %2 {strides = array<i32>} : memref<8x768xf32, #tpu.memory_space<vmem>>, vector<8x768xf32>,
    %4 = vector.extract_strided_slice %0 {offsets = [0, 0], sizes = [8, 16], strides = [1, 1]} : vector<8x224xf32> to vector<8x16xf32>
    %c0_5 = arith.constant 0 : index
    %c0_6 = arith.constant 0 : index
    %5 = vector.load %arg2[%c0_5, %c0_6] : memref<224x768xf32, #tpu.memory_space<vmem>>, vector<16x768xf32>
    %cst_7 = arith.constant dense<0.000000e+00> : vector<8x768xf32>
    %6 = tpu.matmul %4, %5, %cst_7 {dimension_numbers = #tpu.dot_dimension_numbers<[1], [0], [0], [1], [0, 0, 1, 1], [], []>} : vector<8x16xf32>, vector<16x768xf32>, vector<8x768xf32> -> vector<8x768xf32>
    %c0_8 = arith.constant 0 : index
    %c0_9 = arith.constant 0 : index
    %7 = vector.load %arg4[%c0_8, %c0_9] : memref<8x768xf32, #tpu.memory_space<vmem>>, vector<8x768xf32>
    tpu.vector_store %arg4[%c0_8, %c0_9], %6 {strides = array<i32>} : memref<8x768xf32, #tpu.memory_space<vmem>>, vector<8x768xf32>,
    %c0_10 = arith.constant 0 : index
    %c0_11 = arith.constant 0 : index
    %8 = vector.load %arg1[%c0_10, %c0_11] : memref<96x32xf32, #tpu.memory_space<vmem>>, vector<96x32xf32>
    %c0_12 = arith.constant 0 : index
    %c0_13 = arith.constant 0 : index
    %9 = vector.load %arg3[%c0_12, %c0_13] : memref<32x256xf32, #tpu.memory_space<vmem>>, vector<32x256xf32>
    %cst_14 = arith.constant dense<0.000000e+00> : vector<96x256xf32>
    %10 = tpu.matmul %8, %9, %cst_14 {dimension_numbers = #tpu.dot_dimension_numbers<[1], [0], [0], [1], [0, 0, 1, 1], [], []>} : vector<96x32xf32>, vector<32x256xf32>, vector<96x256xf32> -> vector<96x256xf32>
    %c0_15 = arith.constant 0 : index
    %c0_16 = arith.constant 0 : index
    %11 = vector.load %arg6[%c0_15, %c0_16] : memref<96x256xf32, #tpu.memory_space<vmem>>, vector<96x256xf32>
    tpu.vector_store %arg6[%c0_15, %c0_16], %10 {strides = array<i32>} : memref<96x256xf32, #tpu.memory_space<vmem>>, vector<96x256xf32>,
    %12 = vector.extract_strided_slice %2 {offsets = [0, 0], sizes = [8, 256], strides = [1, 1]} : vector<8x768xf32> to vector<8x256xf32>
    %13 = vector.extract_strided_slice %2 {offsets = [0, 256], sizes = [8, 256], strides = [1, 1]} : vector<8x768xf32> to vector<8x256xf32>
    %14 = vector.extract_strided_slice %2 {offsets = [0, 512], sizes = [8, 256], strides = [1, 1]} : vector<8x768xf32> to vector<8x256xf32>
    %15 = vector.extract_strided_slice %10 {offsets = [0, 0], sizes = [8, 256], strides = [1, 1]} : vector<96x256xf32> to vector<8x256xf32>
    %16 = arith.mulf %15, %12 : vector<8x256xf32>
    %17 = vector.extract_strided_slice %10 {offsets = [8, 0], sizes = [8, 256], strides = [1, 1]} : vector<96x256xf32> to vector<8x256xf32>
    %18 = arith.mulf %17, %13 : vector<8x256xf32>
    %19 = arith.addf %16, %18 : vector<8x256xf32>
    %20 = vector.extract_strided_slice %10 {offsets = [16, 0], sizes = [8, 256], strides = [1, 1]} : vector<96x256xf32> to vector<8x256xf32>
    %21 = arith.mulf %20, %14 : vector<8x256xf32>
    %22 = arith.addf %19, %21 : vector<8x256xf32>
    %23 = vector.extract_strided_slice %10 {offsets = [24, 0], sizes = [8, 256], strides = [1, 1]} : vector<96x256xf32> to vector<8x256xf32>
    %24 = arith.addf %22, %23 : vector<8x256xf32>
    %c0_17 = arith.constant 0 : index
    %c0_18 = arith.constant 0 : index
    %25 = vector.load %arg7[%c0_17, %c0_18] : memref<8x768xf32, #tpu.memory_space<vmem>>, vector<8x256xf32>
    tpu.vector_store %arg7[%c0_17, %c0_18], %24 {strides = array<i32>} : memref<8x768xf32, #tpu.memory_space<vmem>>, vector<8x256xf32>,
    %26 = vector.extract_strided_slice %10 {offsets = [32, 0], sizes = [8, 256], strides = [1, 1]} : vector<96x256xf32> to vector<8x256xf32>
    %27 = arith.mulf %26, %12 : vector<8x256xf32>
    %28 = vector.extract_strided_slice %10 {offsets = [40, 0], sizes = [8, 256], strides = [1, 1]} : vector<96x256xf32> to vector<8x256xf32>
    %29 = arith.mulf %28, %13 : vector<8x256xf32>
    %30 = arith.addf %27, %29 : vector<8x256xf32>
    %31 = vector.extract_strided_slice %10 {offsets = [48, 0], sizes = [8, 256], strides = [1, 1]} : vector<96x256xf32> to vector<8x256xf32>
    %32 = arith.mulf %31, %14 : vector<8x256xf32>
    %33 = arith.addf %30, %32 : vector<8x256xf32>
    %34 = vector.extract_strided_slice %10 {offsets = [56, 0], sizes = [8, 256], strides = [1, 1]} : vector<96x256xf32> to vector<8x256xf32>
    %35 = arith.addf %33, %34 : vector<8x256xf32>
    %c0_19 = arith.constant 0 : index
    %c256 = arith.constant 256 : index
    %36 = vector.load %arg7[%c0_19, %c256] : memref<8x768xf32, #tpu.memory_space<vmem>>, vector<8x256xf32>
    tpu.vector_store %arg7[%c0_19, %c256], %35 {strides = array<i32>} : memref<8x768xf32, #tpu.memory_space<vmem>>, vector<8x256xf32>,
    %37 = vector.extract_strided_slice %10 {offsets = [64, 0], sizes = [8, 256], strides = [1, 1]} : vector<96x256xf32> to vector<8x256xf32>
    %38 = arith.mulf %37, %12 : vector<8x256xf32>
    %39 = vector.extract_strided_slice %10 {offsets = [72, 0], sizes = [8, 256], strides = [1, 1]} : vector<96x256xf32> to vector<8x256xf32>
    %40 = arith.mulf %39, %13 : vector<8x256xf32>
    %41 = arith.addf %38, %40 : vector<8x256xf32>
    %42 = vector.extract_strided_slice %10 {offsets = [80, 0], sizes = [8, 256], strides = [1, 1]} : vector<96x256xf32> to vector<8x256xf32>
    %43 = arith.mulf %42, %14 : vector<8x256xf32>
    %44 = arith.addf %41, %43 : vector<8x256xf32>
    %45 = vector.extract_strided_slice %10 {offsets = [88, 0], sizes = [8, 256], strides = [1, 1]} : vector<96x256xf32> to vector<8x256xf32>
    %46 = arith.addf %44, %45 : vector<8x256xf32>
    %c0_20 = arith.constant 0 : index
    %c512 = arith.constant 512 : index
    %47 = vector.load %arg7[%c0_20, %c512] : memref<8x768xf32, #tpu.memory_space<vmem>>, vector<8x256xf32>
    tpu.vector_store %arg7[%c0_20, %c512], %46 {strides = array<i32>} : memref<8x768xf32, #tpu.memory_space<vmem>>, vector<8x256xf32>,
    return
  }
}

</mosaic_0001>

<llo_original>
// kernel: smpl_forward.1
$region0: #{smpl_forward.1}
  #allocation0 [shape = 'u32[]', space=smem, size = 0x4, offset = 0x4, fixed_abs, tag = 'smem constant byte address 0x4 - core index']
  #allocation1 [shape = 'u32[144,128]{1,0:T(1,128)}', space=vmem, size = 0x12000, scoped, tag = 'internal scratch']
  %s0 = inlined_call_operand.vmem [shape: f32[8,224], index: 0, kind: input, shape index: {}]
  %s1 = inlined_call_operand.vmem [shape: f32[96,32], index: 1, kind: input, shape index: {}]
  %s2 = inlined_call_operand.vmem [shape: f32[224,768], index: 2, kind: input, shape index: {}]
  %s3 = inlined_call_operand.vmem [shape: f32[32,256], index: 3, kind: input, shape index: {}]
  %s4 = inlined_call_operand.vmem [shape: f32[8,768], index: 4, kind: output, shape index: {0}]
  %s5 = inlined_call_operand.vmem [shape: f32[8,768], index: 5, kind: output, shape index: {1}]
  %s6 = inlined_call_operand.vmem [shape: f32[96,256], index: 6, kind: output, shape index: {2}]
  %s7 = inlined_call_operand.vmem [shape: f32[8,768], index: 7, kind: output, shape index: {3}]
  %8 = xla_tuple %s4, %s5, %s6, %s7
  %s9 = sld [smem:[#allocation0]]
  $region50: #{smpl_forward.1} parent=0
    _
  %s11 = ssub.s32 1, %s9
  %s12 = scalar_select 0, %s11, %s9
  // Predicated region
  $region2: #{smpl_forward.1} parent=0 // pred_check
    _
  $region3: #{smpl_forward.1} parent=0 // pred_check_branch
    %14 = sbr.rel (0) target = $region5
  $region4: #{smpl_forward.1} parent=0 // pred_region
    _
  $region5: #{smpl_forward.1} parent=0 // pred_fallthru
    _
  // Predicated region
  $region6: #{smpl_forward.1} parent=0 // pred_check
    _
  $region7: #{smpl_forward.1} parent=0 // pred_check_branch
    %16 = sbr.rel (0) target = $region9
  $region8: #{smpl_forward.1} parent=0 // pred_region
    _
  $region9: #{smpl_forward.1} parent=0 // pred_fallthru
    _
  // Predicated region
  $region10: #{smpl_forward.1} parent=0 // pred_check
    _
  $region11: #{smpl_forward.1} parent=0 // pred_check_branch
    %18 = sbr.rel (0) target = $region13
  $region12: #{smpl_forward.1} parent=0 // pred_region
    _
  $region13: #{smpl_forward.1} parent=0 // pred_fallthru
    _
  // Predicated region
  $region14: #{smpl_forward.1} parent=0 // pred_check
    _
  $region15: #{smpl_forward.1} parent=0 // pred_check_branch
    %20 = sbr.rel (0) target = $region17
  $region16: #{smpl_forward.1} parent=0 // pred_region
    _
  $region17: #{smpl_forward.1} parent=0 // pred_fallthru
    _
  %v21 = vld [vmem:[%s0] sm:$0xff]
  %v22 = vld [vmem:[%s0 + $0x8] sm:$0xff]
  %v23 = vld [vmem:[%s2] sm:$0xff]
  %v24 = vld [vmem:[%s2 + $0x8] sm:$0xff]
  %v25 = vld [vmem:[%s2 + $0x10] sm:$0xff]
  %v26 = vld [vmem:[%s2 + $0x18] sm:$0xff]
  %v27 = vld [vmem:[%s2 + $0x20] sm:$0xff]
  %v28 = vld [vmem:[%s2 + $0x28] sm:$0xff]
  %v29 = vld [vmem:[%s2 + $0x30] sm:$0xff]
  %v30 = vld [vmem:[%s2 + $0x38] sm:$0xff]
  %v31 = vld [vmem:[%s2 + $0x40] sm:$0xff]
  %v32 = vld [vmem:[%s2 + $0x48] sm:$0xff]
  %v33 = vld [vmem:[%s2 + $0x50] sm:$0xff]
  %v34 = vld [vmem:[%s2 + $0x58] sm:$0xff]
  %v35 = vld [vmem:[%s2 + $0x60] sm:$0xff]
  %v36 = vld [vmem:[%s2 + $0x68] sm:$0xff]
  %v37 = vld [vmem:[%s2 + $0x70] sm:$0xff]
  %v38 = vld [vmem:[%s2 + $0x78] sm:$0xff]
  %v39 = vld [vmem:[%s2 + $0x80] sm:$0xff]
  %v40 = vld [vmem:[%s2 + $0x88] sm:$0xff]
  %v41 = vld [vmem:[%s2 + $0x90] sm:$0xff]
  %v42 = vld [vmem:[%s2 + $0x98] sm:$0xff]
  %v43 = vld [vmem:[%s2 + $0xa0] sm:$0xff]
  %v44 = vld [vmem:[%s2 + $0xa8] sm:$0xff]
  %v45 = vld [vmem:[%s2 + $0xb0] sm:$0xff]
  %v46 = vld [vmem:[%s2 + $0xb8] sm:$0xff]
  %v47 = vld [vmem:[%s2 + $0xc0] sm:$0xff]
  %v48 = vld [vmem:[%s2 + $0xc8] sm:$0xff]
  %v49 = vld [vmem:[%s2 + $0xd0] sm:$0xff]
  %v50 = vld [vmem:[%s2 + $0xd8] sm:$0xff]
  %v51 = vld [vmem:[%s2 + $0xe0] sm:$0xff]
  %v52 = vld [vmem:[%s2 + $0xe8] sm:$0xff]
  %v53 = vld [vmem:[%s2 + $0xf0] sm:$0xff]
  %v54 = vld [vmem:[%s2 + $0xf8] sm:$0xff]
  %v55 = vld [vmem:[%s2 + $0x100] sm:$0xff]
  %v56 = vld [vmem:[%s2 + $0x108] sm:$0xff]
  %v57 = vld [vmem:[%s2 + $0x110] sm:$0xff]
  %v58 = vld [vmem:[%s2 + $0x118] sm:$0xff]
  %v59 = vld [vmem:[%s2 + $0x120] sm:$0xff]
  %v60 = vld [vmem:[%s2 + $0x128] sm:$0xff]
  %v61 = vld [vmem:[%s2 + $0x130] sm:$0xff]
  %v62 = vld [vmem:[%s2 + $0x138] sm:$0xff]
  %v63 = vld [vmem:[%s2 + $0x140] sm:$0xff]
  %v64 = vld [vmem:[%s2 + $0x148] sm:$0xff]
  %v65 = vld [vmem:[%s2 + $0x150] sm:$0xff]
  %v66 = vld [vmem:[%s2 + $0x158] sm:$0xff]
  %v67 = vld [vmem:[%s2 + $0x160] sm:$0xff]
  %v68 = vld [vmem:[%s2 + $0x168] sm:$0xff]
  %v69 = vld [vmem:[%s2 + $0x170] sm:$0xff]
  %v70 = vld [vmem:[%s2 + $0x178] sm:$0xff]
  %v71 = vld [vmem:[%s2 + $0x180] sm:$0xff]
  %v72 = vld [vmem:[%s2 + $0x188] sm:$0xff]
  %v73 = vld [vmem:[%s2 + $0x190] sm:$0xff]
  %v74 = vld [vmem:[%s2 + $0x198] sm:$0xff]
  %v75 = vld [vmem:[%s2 + $0x1a0] sm:$0xff]
  %v76 = vld [vmem:[%s2 + $0x1a8] sm:$0xff]
  %v77 = vld [vmem:[%s2 + $0x1b0] sm:$0xff]
  %v78 = vld [vmem:[%s2 + $0x1b8] sm:$0xff]
  %v79 = vld [vmem:[%s2 + $0x1c0] sm:$0xff]
  %v80 = vld [vmem:[%s2 + $0x1c8] sm:$0xff]
  %v81 = vld [vmem:[%s2 + $0x1d0] sm:$0xff]
  %v82 = vld [vmem:[%s2 + $0x1d8] sm:$0xff]
  %v83 = vld [vmem:[%s2 + $0x1e0] sm:$0xff]
  %v84 = vld [vmem:[%s2 + $0x1e8] sm:$0xff]
  %v85 = vld [vmem:[%s2 + $0x1f0] sm:$0xff]
  %v86 = vld [vmem:[%s2 + $0x1f8] sm:$0xff]
  %v87 = vld [vmem:[%s2 + $0x200] sm:$0xff]
  %v88 = vld [vmem:[%s2 + $0x208] sm:$0xff]
  %v89 = vld [vmem:[%s2 + $0x210] sm:$0xff]
  %v90 = vld [vmem:[%s2 + $0x218] sm:$0xff]
  %v91 = vld [vmem:[%s2 + $0x220] sm:$0xff]
  %v92 = vld [vmem:[%s2 + $0x228] sm:$0xff]
  %v93 = vld [vmem:[%s2 + $0x230] sm:$0xff]
  %v94 = vld [vmem:[%s2 + $0x238] sm:$0xff]
  %v95 = vld [vmem:[%s2 + $0x240] sm:$0xff]
  %v96 = vld [vmem:[%s2 + $0x248] sm:$0xff]
  %v97 = vld [vmem:[%s2 + $0x250] sm:$0xff]
  %v98 = vld [vmem:[%s2 + $0x258] sm:$0xff]
  %v99 = vld [vmem:[%s2 + $0x260] sm:$0xff]
  %v100 = vld [vmem:[%s2 + $0x268] sm:$0xff]
  %v101 = vld [vmem:[%s2 + $0x270] sm:$0xff]
  %v102 = vld [vmem:[%s2 + $0x278] sm:$0xff]
  %v103 = vld [vmem:[%s2 + $0x280] sm:$0xff]
  %v104 = vld [vmem:[%s2 + $0x288] sm:$0xff]
  %v105 = vld [vmem:[%s2 + $0x290] sm:$0xff]
  %v106 = vld [vmem:[%s2 + $0x298] sm:$0xff]
  %v107 = vld [vmem:[%s2 + $0x2a0] sm:$0xff]
  %v108 = vld [vmem:[%s2 + $0x2a8] sm:$0xff]
  %v109 = vld [vmem:[%s2 + $0x2b0] sm:$0xff]
  %v110 = vld [vmem:[%s2 + $0x2b8] sm:$0xff]
  %v111 = vld [vmem:[%s2 + $0x2c0] sm:$0xff]
  %v112 = vld [vmem:[%s2 + $0x2c8] sm:$0xff]
  %v113 = vld [vmem:[%s2 + $0x2d0] sm:$0xff]
  %v114 = vld [vmem:[%s2 + $0x2d8] sm:$0xff]
  %v115 = vld [vmem:[%s2 + $0x2e0] sm:$0xff]
  %v116 = vld [vmem:[%s2 + $0x2e8] sm:$0xff]
  %v117 = vld [vmem:[%s2 + $0x2f0] sm:$0xff]
  %v118 = vld [vmem:[%s2 + $0x2f8] sm:$0xff]
  %v119 = vld [vmem:[%s2 + $0x300] sm:$0xff]
  %v120 = vld [vmem:[%s2 + $0x308] sm:$0xff]
  %v121 = vld [vmem:[%s2 + $0x310] sm:$0xff]
  %v122 = vld [vmem:[%s2 + $0x318] sm:$0xff]
  %v123 = vld [vmem:[%s2 + $0x320] sm:$0xff]
  %v124 = vld [vmem:[%s2 + $0x328] sm:$0xff]
  %v125 = vld [vmem:[%s2 + $0x330] sm:$0xff]
  %v126 = vld [vmem:[%s2 + $0x338] sm:$0xff]
  %v127 = vld [vmem:[%s2 + $0x340] sm:$0xff]
  %v128 = vld [vmem:[%s2 + $0x348] sm:$0xff]
  %v129 = vld [vmem:[%s2 + $0x350] sm:$0xff]
  %v130 = vld [vmem:[%s2 + $0x358] sm:$0xff]
  %v131 = vld [vmem:[%s2 + $0x360] sm:$0xff]
  %v132 = vld [vmem:[%s2 + $0x368] sm:$0xff]
  %v133 = vld [vmem:[%s2 + $0x370] sm:$0xff]
  %v134 = vld [vmem:[%s2 + $0x378] sm:$0xff]
  %v135 = vld [vmem:[%s2 + $0x380] sm:$0xff]
  %v136 = vld [vmem:[%s2 + $0x388] sm:$0xff]
  %v137 = vld [vmem:[%s2 + $0x390] sm:$0xff]
  %v138 = vld [vmem:[%s2 + $0x398] sm:$0xff]
  %v139 = vld [vmem:[%s2 + $0x3a0] sm:$0xff]
  %v140 = vld [vmem:[%s2 + $0x3a8] sm:$0xff]
  %v141 = vld [vmem:[%s2 + $0x3b0] sm:$0xff]
  %v142 = vld [vmem:[%s2 + $0x3b8] sm:$0xff]
  %v143 = vld [vmem:[%s2 + $0x3c0] sm:$0xff]
  %v144 = vld [vmem:[%s2 + $0x3c8] sm:$0xff]
  %v145 = vld [vmem:[%s2 + $0x3d0] sm:$0xff]
  %v146 = vld [vmem:[%s2 + $0x3d8] sm:$0xff]
  %v147 = vld [vmem:[%s2 + $0x3e0] sm:$0xff]
  %v148 = vld [vmem:[%s2 + $0x3e8] sm:$0xff]
  %v149 = vld [vmem:[%s2 + $0x3f0] sm:$0xff]
  %v150 = vld [vmem:[%s2 + $0x3f8] sm:$0xff]
  %v151 = vld [vmem:[%s2 + $0x400] sm:$0xff]
  %v152 = vld [vmem:[%s2 + $0x408] sm:$0xff]
  %v153 = vld [vmem:[%s2 + $0x410] sm:$0xff]
  %v154 = vld [vmem:[%s2 + $0x418] sm:$0xff]
  %v155 = vld [vmem:[%s2 + $0x420] sm:$0xff]
  %v156 = vld [vmem:[%s2 + $0x428] sm:$0xff]
  %v157 = vld [vmem:[%s2 + $0x430] sm:$0xff]
  %v158 = vld [vmem:[%s2 + $0x438] sm:$0xff]
  %v159 = vld [vmem:[%s2 + $0x440] sm:$0xff]
  %v160 = vld [vmem:[%s2 + $0x448] sm:$0xff]
  %v161 = vld [vmem:[%s2 + $0x450] sm:$0xff]
  %v162 = vld [vmem:[%s2 + $0x458] sm:$0xff]
  %v163 = vld [vmem:[%s2 + $0x460] sm:$0xff]
  %v164 = vld [vmem:[%s2 + $0x468] sm:$0xff]
  %v165 = vld [vmem:[%s2 + $0x470] sm:$0xff]
  %v166 = vld [vmem:[%s2 + $0x478] sm:$0xff]
  %v167 = vld [vmem:[%s2 + $0x480] sm:$0xff]
  %v168 = vld [vmem:[%s2 + $0x488] sm:$0xff]
  %v169 = vld [vmem:[%s2 + $0x490] sm:$0xff]
  %v170 = vld [vmem:[%s2 + $0x498] sm:$0xff]
  %v171 = vld [vmem:[%s2 + $0x4a0] sm:$0xff]
  %v172 = vld [vmem:[%s2 + $0x4a8] sm:$0xff]
  %v173 = vld [vmem:[%s2 + $0x4b0] sm:$0xff]
  %v174 = vld [vmem:[%s2 + $0x4b8] sm:$0xff]
  %v175 = vld [vmem:[%s2 + $0x4c0] sm:$0xff]
  %v176 = vld [vmem:[%s2 + $0x4c8] sm:$0xff]
  %v177 = vld [vmem:[%s2 + $0x4d0] sm:$0xff]
  %v178 = vld [vmem:[%s2 + $0x4d8] sm:$0xff]
  %v179 = vld [vmem:[%s2 + $0x4e0] sm:$0xff]
  %v180 = vld [vmem:[%s2 + $0x4e8] sm:$0xff]
  %v181 = vld [vmem:[%s2 + $0x4f0] sm:$0xff]
  %v182 = vld [vmem:[%s2 + $0x4f8] sm:$0xff]
  %v183 = vld [vmem:[%s2 + $0x500] sm:$0xff]
  %v184 = vld [vmem:[%s2 + $0x508] sm:$0xff]
  %v185 = vld [vmem:[%s2 + $0x510] sm:$0xff]
  %v186 = vld [vmem:[%s2 + $0x518] sm:$0xff]
  %v187 = vld [vmem:[%s2 + $0x520] sm:$0xff]
  %v188 = vld [vmem:[%s2 + $0x528] sm:$0xff]
  %v189 = vld [vmem:[%s2 + $0x530] sm:$0xff]
  %v190 = vld [vmem:[%s2 + $0x538] sm:$0xff]
  %vm191 = vcmask 785408
  %v193 = vsel %vm191, %v22, 0
  %195 = vmatprep.subr.mxu0 %v24
  %196 = vmatpush1.msra.mxu0 %v23
  %197 = vmatprep.subr.mxu0 %v30
  %198 = vmatpush1.msra.mxu0 %v29
  %199 = vmatprep.subr.mxu0 %v36
  %200 = vmatpush1.msra.mxu0 %v35
  %201 = vmatprep.subr.mxu0 %v42
  %202 = vmatpush1.msra.mxu0 %v41
  %203 = vmatprep.subr.mxu0 %v48
  %204 = vmatpush1.msra.mxu0 %v47
  %205 = vmatprep.subr.mxu0 %v54
  %206 = vmatpush1.msra.mxu0 %v53
  %207 = vmatprep.subr.mxu0 %v60
  %208 = vmatpush1.msra.mxu0 %v59
  %209 = vmatprep.subr.mxu0 %v66
  %210 = vmatpush1.msra.mxu0 %v65
  %211 = vmatprep.subr.mxu0 %v72
  %212 = vmatpush1.msra.mxu0 %v71
  %213 = vmatprep.subr.mxu0 %v78
  %214 = vmatpush1.msra.mxu0 %v77
  %215 = vmatprep.subr.mxu0 %v84
  %216 = vmatpush1.msra.mxu0 %v83
  %217 = vmatprep.subr.mxu0 %v90
  %218 = vmatpush1.msra.mxu0 %v89
  %219 = vmatprep.subr.mxu0 %v96
  %220 = vmatpush1.msra.mxu0 %v95
  %221 = vmatprep.subr.mxu0 %v102
  %222 = vmatpush1.msra.mxu0 %v101
  %223 = vmatprep.subr.mxu0 %v108
  %224 = vmatpush1.msra.mxu0 %v107
  %225 = vmatprep.subr.mxu0 %v114
  %226 = vmatpush1.msra.mxu0 %v113
  %227 = vmatprep.subr.mxu0 %v120
  %228 = vmatpush1.msra.mxu0 %v119
  %229 = vmatprep.subr.mxu0 %v126
  %230 = vmatpush1.msra.mxu0 %v125
  %231 = vmatprep.subr.mxu0 %v132
  %232 = vmatpush1.msra.mxu0 %v131
  %233 = vmatprep.subr.mxu0 %v138
  %234 = vmatpush1.msra.mxu0 %v137
  %235 = vmatprep.subr.mxu0 %v144
  %236 = vmatpush1.msra.mxu0 %v143
  %237 = vmatprep.subr.mxu0 %v150
  %238 = vmatpush1.msra.mxu0 %v149
  %239 = vmatprep.subr.mxu0 %v156
  %240 = vmatpush1.msra.mxu0 %v155
  %241 = vmatprep.subr.mxu0 %v162
  %242 = vmatpush1.msra.mxu0 %v161
  %243 = vmatprep.subr.mxu0 %v168
  %244 = vmatpush1.msra.mxu0 %v167
  %245 = vmatprep.subr.mxu0 %v174
  %246 = vmatpush1.msra.mxu0 %v173
  %247 = vmatprep.subr.mxu0 %v180
  %248 = vmatpush1.msra.mxu0 %v179
  %249 = vmatprep.subr.mxu0 %v186
  %250 = vmatpush1.msra.mxu0 %v185
  %251 = vmatprep.subr.mxu0 0.0
  %252 = vmatpush1.msra.mxu0 0.0
  %253 = vmatprep.subr.mxu0 0.0
  %254 = vmatpush1.msra.mxu0 0.0
  %255 = vmatprep.subr.mxu0 0.0
  %256 = vmatpush1.msra.mxu0 0.0
  %257 = vmatprep.subr.mxu0 0.0
  %258 = vmatpush1.msra.mxu0 0.0
  %259 = vmatprep.mubr.f32.mxu0 %v193
  %260 = vmatmul.mubr.f32.gmra.mrb[0].mxu0 %v21
  %v261 = vpop.f32.mrb[0].mxu0
  %v262 = vadd.f32 0.0, %v261
  %v263 = vpop.f32.mrb[0].mxu0
  %v264 = vadd.f32 0.0, %v263
  %265 = vdwg.mxu0
  %266 = vmatprep.subr.mxu0 %v26
  %267 = vmatpush1.msra.mxu0 %v25
  %268 = vmatprep.subr.mxu0 %v32
  %269 = vmatpush1.msra.mxu0 %v31
  %270 = vmatprep.subr.mxu0 %v38
  %271 = vmatpush1.msra.mxu0 %v37
  %272 = vmatprep.subr.mxu0 %v44
  %273 = vmatpush1.msra.mxu0 %v43
  %274 = vmatprep.subr.mxu0 %v50
  %275 = vmatpush1.msra.mxu0 %v49
  %276 = vmatprep.subr.mxu0 %v56
  %277 = vmatpush1.msra.mxu0 %v55
  %278 = vmatprep.subr.mxu0 %v62
  %279 = vmatpush1.msra.mxu0 %v61
  %280 = vmatprep.subr.mxu0 %v68
  %281 = vmatpush1.msra.mxu0 %v67
  %282 = vmatprep.subr.mxu0 %v74
  %283 = vmatpush1.msra.mxu0 %v73
  %284 = vmatprep.subr.mxu0 %v80
  %285 = vmatpush1.msra.mxu0 %v79
  %286 = vmatprep.subr.mxu0 %v86
  %287 = vmatpush1.msra.mxu0 %v85
  %288 = vmatprep.subr.mxu0 %v92
  %289 = vmatpush1.msra.mxu0 %v91
  %290 = vmatprep.subr.mxu0 %v98
  %291 = vmatpush1.msra.mxu0 %v97
  %292 = vmatprep.subr.mxu0 %v104
  %293 = vmatpush1.msra.mxu0 %v103
  %294 = vmatprep.subr.mxu0 %v110
  %295 = vmatpush1.msra.mxu0 %v109
  %296 = vmatprep.subr.mxu0 %v116
  %297 = vmatpush1.msra.mxu0 %v115
  %298 = vmatprep.subr.mxu0 %v122
  %299 = vmatpush1.msra.mxu0 %v121
  %300 = vmatprep.subr.mxu0 %v128
  %301 = vmatpush1.msra.mxu0 %v127
  %302 = vmatprep.subr.mxu0 %v134
  %303 = vmatpush1.msra.mxu0 %v133
  %304 = vmatprep.subr.mxu0 %v140
  %305 = vmatpush1.msra.mxu0 %v139
  %306 = vmatprep.subr.mxu0 %v146
  %307 = vmatpush1.msra.mxu0 %v145
  %308 = vmatprep.subr.mxu0 %v152
  %309 = vmatpush1.msra.mxu0 %v151
  %310 = vmatprep.subr.mxu0 %v158
  %311 = vmatpush1.msra.mxu0 %v157
  %312 = vmatprep.subr.mxu0 %v164
  %313 = vmatpush1.msra.mxu0 %v163
  %314 = vmatprep.subr.mxu0 %v170
  %315 = vmatpush1.msra.mxu0 %v169
  %316 = vmatprep.subr.mxu0 %v176
  %317 = vmatpush1.msra.mxu0 %v175
  %318 = vmatprep.subr.mxu0 %v182
  %319 = vmatpush1.msra.mxu0 %v181
  %320 = vmatprep.subr.mxu0 %v188
  %321 = vmatpush1.msra.mxu0 %v187
  %322 = vmatprep.subr.mxu0 0.0
  %323 = vmatpush1.msra.mxu0 0.0
  %324 = vmatprep.subr.mxu0 0.0
  %325 = vmatpush1.msra.mxu0 0.0
  %326 = vmatprep.subr.mxu0 0.0
  %327 = vmatpush1.msra.mxu0 0.0
  %328 = vmatprep.subr.mxu0 0.0
  %329 = vmatpush1.msra.mxu0 0.0
  %330 = vmatprep.mubr.f32.mxu0 %v193
  %331 = vmatmul.mubr.f32.gmra.mrb[0].mxu0 %v21
  %v332 = vpop.f32.mrb[0].mxu0
  %v333 = vadd.f32 0.0, %v332
  %v334 = vpop.f32.mrb[0].mxu0
  %v335 = vadd.f32 0.0, %v334
  %336 = vdwg.mxu0
  %337 = vmatprep.subr.mxu0 %v28
  %338 = vmatpush1.msra.mxu0 %v27
  %339 = vmatprep.subr.mxu0 %v34
  %340 = vmatpush1.msra.mxu0 %v33
  %341 = vmatprep.subr.mxu0 %v40
  %342 = vmatpush1.msra.mxu0 %v39
  %343 = vmatprep.subr.mxu0 %v46
  %344 = vmatpush1.msra.mxu0 %v45
  %345 = vmatprep.subr.mxu0 %v52
  %346 = vmatpush1.msra.mxu0 %v51
  %347 = vmatprep.subr.mxu0 %v58
  %348 = vmatpush1.msra.mxu0 %v57
  %349 = vmatprep.subr.mxu0 %v64
  %350 = vmatpush1.msra.mxu0 %v63
  %351 = vmatprep.subr.mxu0 %v70
  %352 = vmatpush1.msra.mxu0 %v69
  %353 = vmatprep.subr.mxu0 %v76
  %354 = vmatpush1.msra.mxu0 %v75
  %355 = vmatprep.subr.mxu0 %v82
  %356 = vmatpush1.msra.mxu0 %v81
  %357 = vmatprep.subr.mxu0 %v88
  %358 = vmatpush1.msra.mxu0 %v87
  %359 = vmatprep.subr.mxu0 %v94
  %360 = vmatpush1.msra.mxu0 %v93
  %361 = vmatprep.subr.mxu0 %v100
  %362 = vmatpush1.msra.mxu0 %v99
  %363 = vmatprep.subr.mxu0 %v106
  %364 = vmatpush1.msra.mxu0 %v105
  %365 = vmatprep.subr.mxu0 %v112
  %366 = vmatpush1.msra.mxu0 %v111
  %367 = vmatprep.subr.mxu0 %v118
  %368 = vmatpush1.msra.mxu0 %v117
  %369 = vmatprep.subr.mxu0 %v124
  %370 = vmatpush1.msra.mxu0 %v123
  %371 = vmatprep.subr.mxu0 %v130
  %372 = vmatpush1.msra.mxu0 %v129
  %373 = vmatprep.subr.mxu0 %v136
  %374 = vmatpush1.msra.mxu0 %v135
  %375 = vmatprep.subr.mxu0 %v142
  %376 = vmatpush1.msra.mxu0 %v141
  %377 = vmatprep.subr.mxu0 %v148
  %378 = vmatpush1.msra.mxu0 %v147
  %379 = vmatprep.subr.mxu0 %v154
  %380 = vmatpush1.msra.mxu0 %v153
  %381 = vmatprep.subr.mxu0 %v160
  %382 = vmatpush1.msra.mxu0 %v159
  %383 = vmatprep.subr.mxu0 %v166
  %384 = vmatpush1.msra.mxu0 %v165
  %385 = vmatprep.subr.mxu0 %v172
  %386 = vmatpush1.msra.mxu0 %v171
  %387 = vmatprep.subr.mxu0 %v178
  %388 = vmatpush1.msra.mxu0 %v177
  %389 = vmatprep.subr.mxu0 %v184
  %390 = vmatpush1.msra.mxu0 %v183
  %391 = vmatprep.subr.mxu0 %v190
  %392 = vmatpush1.msra.mxu0 %v189
  %393 = vmatprep.subr.mxu0 0.0
  %394 = vmatpush1.msra.mxu0 0.0
  %395 = vmatprep.subr.mxu0 0.0
  %396 = vmatpush1.msra.mxu0 0.0
  %397 = vmatprep.subr.mxu0 0.0
  %398 = vmatpush1.msra.mxu0 0.0
  %399 = vmatprep.subr.mxu0 0.0
  %400 = vmatpush1.msra.mxu0 0.0
  %401 = vmatprep.mubr.f32.mxu0 %v193
  %402 = vmatmul.mubr.f32.gmra.mrb[0].mxu0 %v21
  %v403 = vpop.f32.mrb[0].mxu0
  %v404 = vadd.f32 0.0, %v403
  %v405 = vpop.f32.mrb[0].mxu0
  %v406 = vadd.f32 0.0, %v405
  %407 = vdwg.mxu0
  %408 = vst [vmem:[%s5] sm:$0xff] %v262
  %409 = vst [vmem:[%s5 + $0x8] sm:$0xff] %v264
  %410 = vst [vmem:[%s5 + $0x10] sm:$0xff] %v333
  %411 = vst [vmem:[%s5 + $0x18] sm:$0xff] %v335
  %412 = vst [vmem:[%s5 + $0x20] sm:$0xff] %v404
  %413 = vst [vmem:[%s5 + $0x28] sm:$0xff] %v406
  %v414 = vld [vmem:[%s2] sm:$0xff]
  %v415 = vld [vmem:[%s2 + $0x8] sm:$0xff]
  %v416 = vld [vmem:[%s2 + $0x10] sm:$0xff]
  %v417 = vld [vmem:[%s2 + $0x18] sm:$0xff]
  %v418 = vld [vmem:[%s2 + $0x20] sm:$0xff]
  %v419 = vld [vmem:[%s2 + $0x28] sm:$0xff]
  %v420 = vld [vmem:[%s2 + $0x30] sm:$0xff]
  %v421 = vld [vmem:[%s2 + $0x38] sm:$0xff]
  %v422 = vld [vmem:[%s2 + $0x40] sm:$0xff]
  %v423 = vld [vmem:[%s2 + $0x48] sm:$0xff]
  %v424 = vld [vmem:[%s2 + $0x50] sm:$0xff]
  %v425 = vld [vmem:[%s2 + $0x58] sm:$0xff]
  %vm426 = vcmask 130048
  %v428 = vsel %vm426, %v21, 0
  %430 = vmatprep.subr.mxu0 %v415
  %431 = vmatpush1.msra.mxu0 %v414
  %432 = vmatprep.subr.mxu0 %v421
  %433 = vmatpush1.msra.mxu0 %v420
  %434 = vmatprep.subr.mxu0 0.0
  %435 = vmatpush1.msra.mxu0 0.0
  %436 = vmatprep.subr.mxu0 0.0
  %437 = vmatpush1.msra.mxu0 0.0
  %438 = vmatprep.subr.mxu0 0.0
  %439 = vmatpush1.msra.mxu0 0.0
  %440 = vmatprep.subr.mxu0 0.0
  %441 = vmatpush1.msra.mxu0 0.0
  %442 = vmatprep.subr.mxu0 0.0
  %443 = vmatpush1.msra.mxu0 0.0
  %444 = vmatprep.subr.mxu0 0.0
  %445 = vmatpush1.msra.mxu0 0.0
  %446 = vmatprep.subr.mxu0 0.0
  %447 = vmatpush1.msra.mxu0 0.0
  %448 = vmatprep.subr.mxu0 0.0
  %449 = vmatpush1.msra.mxu0 0.0
  %450 = vmatprep.subr.mxu0 0.0
  %451 = vmatpush1.msra.mxu0 0.0
  %452 = vmatprep.subr.mxu0 0.0
  %453 = vmatpush1.msra.mxu0 0.0
  %454 = vmatprep.subr.mxu0 0.0
  %455 = vmatpush1.msra.mxu0 0.0
  %456 = vmatprep.subr.mxu0 0.0
  %457 = vmatpush1.msra.mxu0 0.0
  %458 = vmatprep.subr.mxu0 0.0
  %459 = vmatpush1.msra.mxu0 0.0
  %460 = vmatprep.subr.mxu0 0.0
  %461 = vmatpush1.msra.mxu0 0.0
  %462 = vmatprep.subr.mxu0 0.0
  %463 = vmatpush1.msra.mxu0 0.0
  %464 = vmatprep.subr.mxu0 0.0
  %465 = vmatpush1.msra.mxu0 0.0
  %466 = vmatprep.subr.mxu0 0.0
  %467 = vmatpush1.msra.mxu0 0.0
  %468 = vmatprep.subr.mxu0 0.0
  %469 = vmatpush1.msra.mxu0 0.0
  %470 = vmatprep.subr.mxu0 0.0
  %471 = vmatpush1.msra.mxu0 0.0
  %472 = vmatprep.subr.mxu0 0.0
  %473 = vmatpush1.msra.mxu0 0.0
  %474 = vmatprep.subr.mxu0 0.0
  %475 = vmatpush1.msra.mxu0 0.0
  %476 = vmatprep.subr.mxu0 0.0
  %477 = vmatpush1.msra.mxu0 0.0
  %478 = vmatprep.subr.mxu0 0.0
  %479 = vmatpush1.msra.mxu0 0.0
  %480 = vmatprep.subr.mxu0 0.0
  %481 = vmatpush1.msra.mxu0 0.0
  %482 = vmatprep.subr.mxu0 0.0
  %483 = vmatpush1.msra.mxu0 0.0
  %484 = vmatprep.subr.mxu0 0.0
  %485 = vmatpush1.msra.mxu0 0.0
  %486 = vmatprep.subr.mxu0 0.0
  %487 = vmatpush1.msra.mxu0 0.0
  %488 = vmatprep.subr.mxu0 0.0
  %489 = vmatpush1.msra.mxu0 0.0
  %490 = vmatprep.subr.mxu0 0.0
  %491 = vmatpush1.msra.mxu0 0.0
  %492 = vmatprep.subr.mxu0 0.0
  %493 = vmatpush1.msra.mxu0 0.0
  %494 = vmatprep.mubr.f32.mxu0 0.0
  %495 = vmatmul.mubr.f32.gmra.mrb[0].mxu0 %v428
  %v496 = vpop.f32.mrb[0].mxu0
  %v497 = vadd.f32 0.0, %v496
  %v498 = vpop.f32.mrb[0].mxu0
  %v499 = vadd.f32 0.0, %v498
  %500 = vdwg.mxu0
  %501 = vmatprep.subr.mxu0 %v417
  %502 = vmatpush1.msra.mxu0 %v416
  %503 = vmatprep.subr.mxu0 %v423
  %504 = vmatpush1.msra.mxu0 %v422
  %505 = vmatprep.subr.mxu0 0.0
  %506 = vmatpush1.msra.mxu0 0.0
  %507 = vmatprep.subr.mxu0 0.0
  %508 = vmatpush1.msra.mxu0 0.0
  %509 = vmatprep.subr.mxu0 0.0
  %510 = vmatpush1.msra.mxu0 0.0
  %511 = vmatprep.subr.mxu0 0.0
  %512 = vmatpush1.msra.mxu0 0.0
  %513 = vmatprep.subr.mxu0 0.0
  %514 = vmatpush1.msra.mxu0 0.0
  %515 = vmatprep.subr.mxu0 0.0
  %516 = vmatpush1.msra.mxu0 0.0
  %517 = vmatprep.subr.mxu0 0.0
  %518 = vmatpush1.msra.mxu0 0.0
  %519 = vmatprep.subr.mxu0 0.0
  %520 = vmatpush1.msra.mxu0 0.0
  %521 = vmatprep.subr.mxu0 0.0
  %522 = vmatpush1.msra.mxu0 0.0
  %523 = vmatprep.subr.mxu0 0.0
  %524 = vmatpush1.msra.mxu0 0.0
  %525 = vmatprep.subr.mxu0 0.0
  %526 = vmatpush1.msra.mxu0 0.0
  %527 = vmatprep.subr.mxu0 0.0
  %528 = vmatpush1.msra.mxu0 0.0
  %529 = vmatprep.subr.mxu0 0.0
  %530 = vmatpush1.msra.mxu0 0.0
  %531 = vmatprep.subr.mxu0 0.0
  %532 = vmatpush1.msra.mxu0 0.0
  %533 = vmatprep.subr.mxu0 0.0
  %534 = vmatpush1.msra.mxu0 0.0
  %535 = vmatprep.subr.mxu0 0.0
  %536 = vmatpush1.msra.mxu0 0.0
  %537 = vmatprep.subr.mxu0 0.0
  %538 = vmatpush1.msra.mxu0 0.0
  %539 = vmatprep.subr.mxu0 0.0
  %540 = vmatpush1.msra.mxu0 0.0
  %541 = vmatprep.subr.mxu0 0.0
  %542 = vmatpush1.msra.mxu0 0.0
  %543 = vmatprep.subr.mxu0 0.0
  %544 = vmatpush1.msra.mxu0 0.0
  %545 = vmatprep.subr.mxu0 0.0
  %546 = vmatpush1.msra.mxu0 0.0
  %547 = vmatprep.subr.mxu0 0.0
  %548 = vmatpush1.msra.mxu0 0.0
  %549 = vmatprep.subr.mxu0 0.0
  %550 = vmatpush1.msra.mxu0 0.0
  %551 = vmatprep.subr.mxu0 0.0
  %552 = vmatpush1.msra.mxu0 0.0
  %553 = vmatprep.subr.mxu0 0.0
  %554 = vmatpush1.msra.mxu0 0.0
  %555 = vmatprep.subr.mxu0 0.0
  %556 = vmatpush1.msra.mxu0 0.0
  %557 = vmatprep.subr.mxu0 0.0
  %558 = vmatpush1.msra.mxu0 0.0
  %559 = vmatprep.subr.mxu0 0.0
  %560 = vmatpush1.msra.mxu0 0.0
  %561 = vmatprep.subr.mxu0 0.0
  %562 = vmatpush1.msra.mxu0 0.0
  %563 = vmatprep.subr.mxu0 0.0
  %564 = vmatpush1.msra.mxu0 0.0
  %565 = vmatprep.mubr.f32.mxu0 0.0
  %566 = vmatmul.mubr.f32.gmra.mrb[0].mxu0 %v428
  %v567 = vpop.f32.mrb[0].mxu0
  %v568 = vadd.f32 0.0, %v567
  %v569 = vpop.f32.mrb[0].mxu0
  %v570 = vadd.f32 0.0, %v569
  %571 = vdwg.mxu0
  %572 = vmatprep.subr.mxu0 %v419
  %573 = vmatpush1.msra.mxu0 %v418
  %574 = vmatprep.subr.mxu0 %v425
  %575 = vmatpush1.msra.mxu0 %v424
  %576 = vmatprep.subr.mxu0 0.0
  %577 = vmatpush1.msra.mxu0 0.0
  %578 = vmatprep.subr.mxu0 0.0
  %579 = vmatpush1.msra.mxu0 0.0
  %580 = vmatprep.subr.mxu0 0.0
  %581 = vmatpush1.msra.mxu0 0.0
  %582 = vmatprep.subr.mxu0 0.0
  %583 = vmatpush1.msra.mxu0 0.0
  %584 = vmatprep.subr.mxu0 0.0
  %585 = vmatpush1.msra.mxu0 0.0
  %586 = vmatprep.subr.mxu0 0.0
  %587 = vmatpush1.msra.mxu0 0.0
  %588 = vmatprep.subr.mxu0 0.0
  %589 = vmatpush1.msra.mxu0 0.0
  %590 = vmatprep.subr.mxu0 0.0
  %591 = vmatpush1.msra.mxu0 0.0
  %592 = vmatprep.subr.mxu0 0.0
  %593 = vmatpush1.msra.mxu0 0.0
  %594 = vmatprep.subr.mxu0 0.0
  %595 = vmatpush1.msra.mxu0 0.0
  %596 = vmatprep.subr.mxu0 0.0
  %597 = vmatpush1.msra.mxu0 0.0
  %598 = vmatprep.subr.mxu0 0.0
  %599 = vmatpush1.msra.mxu0 0.0
  %600 = vmatprep.subr.mxu0 0.0
  %601 = vmatpush1.msra.mxu0 0.0
  %602 = vmatprep.subr.mxu0 0.0
  %603 = vmatpush1.msra.mxu0 0.0
  %604 = vmatprep.subr.mxu0 0.0
  %605 = vmatpush1.msra.mxu0 0.0
  %606 = vmatprep.subr.mxu0 0.0
  %607 = vmatpush1.msra.mxu0 0.0
  %608 = vmatprep.subr.mxu0 0.0
  %609 = vmatpush1.msra.mxu0 0.0
  %610 = vmatprep.subr.mxu0 0.0
  %611 = vmatpush1.msra.mxu0 0.0
  %612 = vmatprep.subr.mxu0 0.0
  %613 = vmatpush1.msra.mxu0 0.0
  %614 = vmatprep.subr.mxu0 0.0
  %615 = vmatpush1.msra.mxu0 0.0
  %616 = vmatprep.subr.mxu0 0.0
  %617 = vmatpush1.msra.mxu0 0.0
  %618 = vmatprep.subr.mxu0 0.0
  %619 = vmatpush1.msra.mxu0 0.0
  %620 = vmatprep.subr.mxu0 0.0
  %621 = vmatpush1.msra.mxu0 0.0
  %622 = vmatprep.subr.mxu0 0.0
  %623 = vmatpush1.msra.mxu0 0.0
  %624 = vmatprep.subr.mxu0 0.0
  %625 = vmatpush1.msra.mxu0 0.0
  %626 = vmatprep.subr.mxu0 0.0
  %627 = vmatpush1.msra.mxu0 0.0
  %628 = vmatprep.subr.mxu0 0.0
  %629 = vmatpush1.msra.mxu0 0.0
  %630 = vmatprep.subr.mxu0 0.0
  %631 = vmatpush1.msra.mxu0 0.0
  %632 = vmatprep.subr.mxu0 0.0
  %633 = vmatpush1.msra.mxu0 0.0
  %634 = vmatprep.subr.mxu0 0.0
  %635 = vmatpush1.msra.mxu0 0.0
  %636 = vmatprep.mubr.f32.mxu0 0.0
  %637 = vmatmul.mubr.f32.gmra.mrb[0].mxu0 %v428
  %v638 = vpop.f32.mrb[0].mxu0
  %v639 = vadd.f32 0.0, %v638
  %v640 = vpop.f32.mrb[0].mxu0
  %v641 = vadd.f32 0.0, %v640
  %642 = vdwg.mxu0
  %643 = vst [vmem:[%s4] sm:$0xff] %v497
  %644 = vst [vmem:[%s4 + $0x8] sm:$0xff] %v499
  %645 = vst [vmem:[%s4 + $0x10] sm:$0xff] %v568
  %646 = vst [vmem:[%s4 + $0x18] sm:$0xff] %v570
  %647 = vst [vmem:[%s4 + $0x20] sm:$0xff] %v639
  %648 = vst [vmem:[%s4 + $0x28] sm:$0xff] %v641
  %v649 = vld [vmem:[%s1] sm:$0xff]
  %v650 = vld [vmem:[%s1 + $0x8] sm:$0xff]
  %v651 = vld [vmem:[%s1 + $0x10] sm:$0xff]
  %v652 = vld [vmem:[%s1 + $0x18] sm:$0xff]
  %v653 = vld [vmem:[%s1 + $0x20] sm:$0xff]
  %v654 = vld [vmem:[%s1 + $0x28] sm:$0xff]
  %v655 = vld [vmem:[%s1 + $0x30] sm:$0xff]
  %v656 = vld [vmem:[%s1 + $0x38] sm:$0xff]
  %v657 = vld [vmem:[%s1 + $0x40] sm:$0xff]
  %v658 = vld [vmem:[%s1 + $0x48] sm:$0xff]
  %v659 = vld [vmem:[%s1 + $0x50] sm:$0xff]
  %v660 = vld [vmem:[%s1 + $0x58] sm:$0xff]
  %v661 = vld [vmem:[%s3] sm:$0xff]
  %v662 = vld [vmem:[%s3 + $0x8] sm:$0xff]
  %v663 = vld [vmem:[%s3 + $0x10] sm:$0xff]
  %v664 = vld [vmem:[%s3 + $0x18] sm:$0xff]
  %v665 = vld [vmem:[%s3 + $0x20] sm:$0xff]
  %v666 = vld [vmem:[%s3 + $0x28] sm:$0xff]
  %v667 = vld [vmem:[%s3 + $0x30] sm:$0xff]
  %v668 = vld [vmem:[%s3 + $0x38] sm:$0xff]
  %vm669 = vcmask 261120
  %v671 = vsel %vm669, %v649, 0
  %v674 = vsel %vm669, %v650, 0
  %v677 = vsel %vm669, %v651, 0
  %v680 = vsel %vm669, %v652, 0
  %v683 = vsel %vm669, %v653, 0
  %v686 = vsel %vm669, %v654, 0
  %v689 = vsel %vm669, %v655, 0
  %v692 = vsel %vm669, %v656, 0
  %v695 = vsel %vm669, %v657, 0
  %v698 = vsel %vm669, %v658, 0
  %v701 = vsel %vm669, %v659, 0
  %v704 = vsel %vm669, %v660, 0
  %706 = vmatprep.subr.mxu0 %v662
  %707 = vmatpush1.msra.mxu0 %v661
  %708 = vmatprep.subr.mxu0 %v664
  %709 = vmatpush1.msra.mxu0 %v663
  %710 = vmatprep.subr.mxu0 %v666
  %711 = vmatpush1.msra.mxu0 %v665
  %712 = vmatprep.subr.mxu0 %v668
  %713 = vmatpush1.msra.mxu0 %v667
  %714 = vmatprep.subr.mxu0 0.0
  %715 = vmatpush1.msra.mxu0 0.0
  %716 = vmatprep.subr.mxu0 0.0
  %717 = vmatpush1.msra.mxu0 0.0
  %718 = vmatprep.subr.mxu0 0.0
  %719 = vmatpush1.msra.mxu0 0.0
  %720 = vmatprep.subr.mxu0 0.0
  %721 = vmatpush1.msra.mxu0 0.0
  %722 = vmatprep.subr.mxu0 0.0
  %723 = vmatpush1.msra.mxu0 0.0
  %724 = vmatprep.subr.mxu0 0.0
  %725 = vmatpush1.msra.mxu0 0.0
  %726 = vmatprep.subr.mxu0 0.0
  %727 = vmatpush1.msra.mxu0 0.0
  %728 = vmatprep.subr.mxu0 0.0
  %729 = vmatpush1.msra.mxu0 0.0
  %730 = vmatprep.subr.mxu0 0.0
  %731 = vmatpush1.msra.mxu0 0.0
  %732 = vmatprep.subr.mxu0 0.0
  %733 = vmatpush1.msra.mxu0 0.0
  %734 = vmatprep.subr.mxu0 0.0
  %735 = vmatpush1.msra.mxu0 0.0
  %736 = vmatprep.subr.mxu0 0.0
  %737 = vmatpush1.msra.mxu0 0.0
  %738 = vmatprep.subr.mxu0 0.0
  %739 = vmatpush1.msra.mxu0 0.0
  %740 = vmatprep.subr.mxu0 0.0
  %741 = vmatpush1.msra.mxu0 0.0
  %742 = vmatprep.subr.mxu0 0.0
  %743 = vmatpush1.msra.mxu0 0.0
  %744 = vmatprep.subr.mxu0 0.0
  %745 = vmatpush1.msra.mxu0 0.0
  %746 = vmatprep.subr.mxu0 0.0
  %747 = vmatpush1.msra.mxu0 0.0
  %748 = vmatprep.subr.mxu0 0.0
  %749 = vmatpush1.msra.mxu0 0.0
  %750 = vmatprep.subr.mxu0 0.0
  %751 = vmatpush1.msra.mxu0 0.0
  %752 = vmatprep.subr.mxu0 0.0
  %753 = vmatpush1.msra.mxu0 0.0
  %754 = vmatprep.subr.mxu0 0.0
  %755 = vmatpush1.msra.mxu0 0.0
  %756 = vmatprep.subr.mxu0 0.0
  %757 = vmatpush1.msra.mxu0 0.0
  %758 = vmatprep.subr.mxu0 0.0
  %759 = vmatpush1.msra.mxu0 0.0
  %760 = vmatprep.subr.mxu0 0.0
  %761 = vmatpush1.msra.mxu0 0.0
  %762 = vmatprep.subr.mxu0 0.0
  %763 = vmatpush1.msra.mxu0 0.0
  %764 = vmatprep.subr.mxu0 0.0
  %765 = vmatpush1.msra.mxu0 0.0
  %766 = vmatprep.subr.mxu0 0.0
  %767 = vmatpush1.msra.mxu0 0.0
  %768 = vmatprep.subr.mxu0 0.0
  %769 = vmatpush1.msra.mxu0 0.0
  %770 = vmatprep.mubr.f32.mxu0 0.0
  %771 = vmatmul.mubr.f32.gmra.mrb[0].mxu0 %v671
  %v772 = vpop.f32.mrb[0].mxu0
  %v773 = vadd.f32 0.0, %v772
  %v774 = vpop.f32.mrb[0].mxu0
  %v775 = vadd.f32 0.0, %v774
  %776 = vmatprep.mubr.f32.mxu0 0.0
  %777 = vmatmul.mubr.f32.gmra.mrb[0].mxu0 %v674
  %v778 = vpop.f32.mrb[0].mxu0
  %v779 = vadd.f32 0.0, %v778
  %v780 = vpop.f32.mrb[0].mxu0
  %v781 = vadd.f32 0.0, %v780
  %782 = vmatprep.mubr.f32.mxu0 0.0
  %783 = vmatmul.mubr.f32.gmra.mrb[0].mxu0 %v677
  %v784 = vpop.f32.mrb[0].mxu0
  %v785 = vadd.f32 0.0, %v784
  %v786 = vpop.f32.mrb[0].mxu0
  %v787 = vadd.f32 0.0, %v786
  %788 = vmatprep.mubr.f32.mxu0 0.0
  %789 = vmatmul.mubr.f32.gmra.mrb[0].mxu0 %v680
  %v790 = vpop.f32.mrb[0].mxu0
  %v791 = vadd.f32 0.0, %v790
  %v792 = vpop.f32.mrb[0].mxu0
  %v793 = vadd.f32 0.0, %v792
  %794 = vmatprep.mubr.f32.mxu0 0.0
  %795 = vmatmul.mubr.f32.gmra.mrb[0].mxu0 %v683
  %v796 = vpop.f32.mrb[0].mxu0
  %v797 = vadd.f32 0.0, %v796
  %v798 = vpop.f32.mrb[0].mxu0
  %v799 = vadd.f32 0.0, %v798
  %800 = vmatprep.mubr.f32.mxu0 0.0
  %801 = vmatmul.mubr.f32.gmra.mrb[0].mxu0 %v686
  %v802 = vpop.f32.mrb[0].mxu0
  %v803 = vadd.f32 0.0, %v802
  %v804 = vpop.f32.mrb[0].mxu0
  %v805 = vadd.f32 0.0, %v804
  %806 = vmatprep.mubr.f32.mxu0 0.0
  %807 = vmatmul.mubr.f32.gmra.mrb[0].mxu0 %v689
  %v808 = vpop.f32.mrb[0].mxu0
  %v809 = vadd.f32 0.0, %v808
  %v810 = vpop.f32.mrb[0].mxu0
  %v811 = vadd.f32 0.0, %v810
  %812 = vmatprep.mubr.f32.mxu0 0.0
  %813 = vmatmul.mubr.f32.gmra.mrb[0].mxu0 %v692
  %v814 = vpop.f32.mrb[0].mxu0
  %v815 = vadd.f32 0.0, %v814
  %v816 = vpop.f32.mrb[0].mxu0
  %v817 = vadd.f32 0.0, %v816
  %818 = vmatprep.mubr.f32.mxu0 0.0
  %819 = vmatmul.mubr.f32.gmra.mrb[0].mxu0 %v695
  %v820 = vpop.f32.mrb[0].mxu0
  %v821 = vadd.f32 0.0, %v820
  %v822 = vpop.f32.mrb[0].mxu0
  %v823 = vadd.f32 0.0, %v822
  %824 = vmatprep.mubr.f32.mxu0 0.0
  %825 = vmatmul.mubr.f32.gmra.mrb[0].mxu0 %v698
  %v826 = vpop.f32.mrb[0].mxu0
  %v827 = vadd.f32 0.0, %v826
  %v828 = vpop.f32.mrb[0].mxu0
  %v829 = vadd.f32 0.0, %v828
  %830 = vmatprep.mubr.f32.mxu0 0.0
  %831 = vmatmul.mubr.f32.gmra.mrb[0].mxu0 %v701
  %v832 = vpop.f32.mrb[0].mxu0
  %v833 = vadd.f32 0.0, %v832
  %v834 = vpop.f32.mrb[0].mxu0
  %v835 = vadd.f32 0.0, %v834
  %836 = vmatprep.mubr.f32.mxu0 0.0
  %837 = vmatmul.mubr.f32.gmra.mrb[0].mxu0 %v704
  %v838 = vpop.f32.mrb[0].mxu0
  %v839 = vadd.f32 0.0, %v838
  %v840 = vpop.f32.mrb[0].mxu0
  %v841 = vadd.f32 0.0, %v840
  %842 = vdwg.mxu0
  %843 = vst [vmem:[%s6] sm:$0xff] %v773
  %844 = vst [vmem:[%s6 + $0x8] sm:$0xff] %v775
  %845 = vst [vmem:[%s6 + $0x10] sm:$0xff] %v779
  %846 = vst [vmem:[%s6 + $0x18] sm:$0xff] %v781
  %847 = vst [vmem:[%s6 + $0x20] sm:$0xff] %v785
  %848 = vst [vmem:[%s6 + $0x28] sm:$0xff] %v787
  %849 = vst [vmem:[%s6 + $0x30] sm:$0xff] %v791
  %850 = vst [vmem:[%s6 + $0x38] sm:$0xff] %v793
  %851 = vst [vmem:[%s6 + $0x40] sm:$0xff] %v797
  %852 = vst [vmem:[%s6 + $0x48] sm:$0xff] %v799
  %853 = vst [vmem:[%s6 + $0x50] sm:$0xff] %v803
  %854 = vst [vmem:[%s6 + $0x58] sm:$0xff] %v805
  %855 = vst [vmem:[%s6 + $0x60] sm:$0xff] %v809
  %856 = vst [vmem:[%s6 + $0x68] sm:$0xff] %v811
  %857 = vst [vmem:[%s6 + $0x70] sm:$0xff] %v815
  %858 = vst [vmem:[%s6 + $0x78] sm:$0xff] %v817
  %859 = vst [vmem:[%s6 + $0x80] sm:$0xff] %v821
  %860 = vst [vmem:[%s6 + $0x88] sm:$0xff] %v823
  %861 = vst [vmem:[%s6 + $0x90] sm:$0xff] %v827
  %862 = vst [vmem:[%s6 + $0x98] sm:$0xff] %v829
  %863 = vst [vmem:[%s6 + $0xa0] sm:$0xff] %v833
  %864 = vst [vmem:[%s6 + $0xa8] sm:$0xff] %v835
  %865 = vst [vmem:[%s6 + $0xb0] sm:$0xff] %v839
  %866 = vst [vmem:[%s6 + $0xb8] sm:$0xff] %v841
  %v867 = vmul.f32 %v773, %v262
  %v868 = vmul.f32 %v775, %v264
  %v869 = vmul.f32 %v779, %v333
  %v870 = vmul.f32 %v781, %v335
  %v871 = vadd.f32 %v867, %v869
  %v872 = vadd.f32 %v868, %v870
  %v873 = vmul.f32 %v785, %v404
  %v874 = vmul.f32 %v787, %v406
  %v875 = vadd.f32 %v871, %v873
  %v876 = vadd.f32 %v872, %v874
  %v877 = vadd.f32 %v875, %v791
  %v878 = vadd.f32 %v876, %v793
  %879 = vst [vmem:[%s7] sm:$0xff] %v877
  %880 = vst [vmem:[%s7 + $0x8] sm:$0xff] %v878
  %v881 = vmul.f32 %v797, %v262
  %v882 = vmul.f32 %v799, %v264
  %v883 = vmul.f32 %v803, %v333
  %v884 = vmul.f32 %v805, %v335
  %v885 = vadd.f32 %v881, %v883
  %v886 = vadd.f32 %v882, %v884
  %v887 = vmul.f32 %v809, %v404
  %v888 = vmul.f32 %v811, %v406
  %v889 = vadd.f32 %v885, %v887
  %v890 = vadd.f32 %v886, %v888
  %v891 = vadd.f32 %v889, %v815
  %v892 = vadd.f32 %v890, %v817
  %893 = vst [vmem:[%s7 + $0x10] sm:$0xff] %v891
  %894 = vst [vmem:[%s7 + $0x18] sm:$0xff] %v892
  %v895 = vmul.f32 %v821, %v262
  %v896 = vmul.f32 %v823, %v264
  %v897 = vmul.f32 %v827, %v333
  %v898 = vmul.f32 %v829, %v335
  %v899 = vadd.f32 %v895, %v897
  %v900 = vadd.f32 %v896, %v898
  %v901 = vmul.f32 %v833, %v404
  %v902 = vmul.f32 %v835, %v406
  %v903 = vadd.f32 %v899, %v901
  %v904 = vadd.f32 %v900, %v902
  %v905 = vadd.f32 %v903, %v839
  %v906 = vadd.f32 %v904, %v841
  %907 = vst [vmem:[%s7 + $0x20] sm:$0xff] %v905
  %908 = vst [vmem:[%s7 + $0x28] sm:$0xff] %v906
  // Predicated region
  $region18: #{smpl_forward.1} parent=0 // pred_check
    _
  $region19: #{smpl_forward.1} parent=0 // pred_check_branch
    %910 = sbr.rel (0) target = $region21
  $region20: #{smpl_forward.1} parent=0 // pred_region
    _
  $region21: #{smpl_forward.1} parent=0 // pred_fallthru
    _
  // Predicated region
  $region22: #{smpl_forward.1} parent=0 // pred_check
    _
  $region23: #{smpl_forward.1} parent=0 // pred_check_branch
    %912 = sbr.rel (0) target = $region25
  $region24: #{smpl_forward.1} parent=0 // pred_region
    _
  $region25: #{smpl_forward.1} parent=0 // pred_fallthru
    _
  // Predicated region
  $region26: #{smpl_forward.1} parent=0 // pred_check
    _
  $region27: #{smpl_forward.1} parent=0 // pred_check_branch
    %914 = sbr.rel (0) target = $region29
  $region28: #{smpl_forward.1} parent=0 // pred_region
    _
  $region29: #{smpl_forward.1} parent=0 // pred_fallthru
    _
  // Predicated region
  $region30: #{smpl_forward.1} parent=0 // pred_check
    _
  $region31: #{smpl_forward.1} parent=0 // pred_check_branch
    %916 = sbr.rel (0) target = $region33
  $region32: #{smpl_forward.1} parent=0 // pred_region
    _
  $region33: #{smpl_forward.1} parent=0 // pred_fallthru
    _
  // Predicated region
  $region34: #{smpl_forward.1} parent=0 // pred_check
    _
  $region35: #{smpl_forward.1} parent=0 // pred_check_branch
    %918 = sbr.rel (0) target = $region37
  $region36: #{smpl_forward.1} parent=0 // pred_region
    _
  $region37: #{smpl_forward.1} parent=0 // pred_fallthru
    _
  // Predicated region
  $region38: #{smpl_forward.1} parent=0 // pred_check
    _
  $region39: #{smpl_forward.1} parent=0 // pred_check_branch
    %920 = sbr.rel (0) target = $region41
  $region40: #{smpl_forward.1} parent=0 // pred_region
    _
  $region41: #{smpl_forward.1} parent=0 // pred_fallthru
    _
  // Predicated region
  $region42: #{smpl_forward.1} parent=0 // pred_check
    _
  $region43: #{smpl_forward.1} parent=0 // pred_check_branch
    %922 = sbr.rel (0) target = $region45
  $region44: #{smpl_forward.1} parent=0 // pred_region
    _
  $region45: #{smpl_forward.1} parent=0 // pred_fallthru
    _
  // Predicated region
  $region46: #{smpl_forward.1} parent=0 // pred_check
    _
  $region47: #{smpl_forward.1} parent=0 // pred_check_branch
    %924 = sbr.rel (0) target = $region49
  $region48: #{smpl_forward.1} parent=0 // pred_region
    _
  $region49: #{smpl_forward.1} parent=0 // pred_fallthru
    _

</llo_original>
